<compile_context>
chip_gen: v6e
topology: v6e:2x2x1
jax: 0.10.0
libtpu: 0.0.40
codegen_flags: <defaults>
</compile_context>

<pallas_src>
from functools import lru_cache
from typing import NamedTuple

import numpy as np
import jax
import jax.numpy as jnp
from jax import lax
from jax.experimental import pallas as pl
from jax.experimental.pallas import tpu as pltpu


class PairlistData(NamedTuple):
    pair_indices: np.ndarray   # (2, n_pairs) int64
    d_ij: np.ndarray           # (n_pairs, 1) float32
    r_ij: np.ndarray           # (n_pairs, 3) float32


class NNPInput(NamedTuple):
    positions: jnp.ndarray                # (n_atoms, 3) float32
    atomic_subsystem_indices: np.ndarray  # (n_atoms,)
    box_vectors: np.ndarray               # (3, 3)
    is_periodic: bool


def _round_up(x: int, m: int) -> int:
    return ((x + m - 1) // m) * m


def _device_kind() -> str:
    try:
        return jax.devices()[0].device_kind.lower()
    except Exception:
        return ""


def _vmem_params():
    """(vmem_limit_bytes, sizing_budget_bytes) per TPU generation."""
    kind = _device_kind()
    if "v7" in kind or "7x" in kind:
        # v7x: 64 MiB physical VMEM per TensorCore -> keep the limit <= ~48 MiB
        return 48 * 1024 * 1024, 32 * 1024 * 1024
    # v5e / v6e: 128 MiB physical VMEM -> raise scoped limit to 64 MiB
    return 64 * 1024 * 1024, 48 * 1024 * 1024


def _choose_tile_p(n_pairs: int, n_pad: int, requested: int,
                   sizing_budget: int) -> int:
    """Largest pair-tile that (a) does not over-pad small systems and (b) keeps
    the O(n_pad*tile_p) one-hot temporaries (~16 B/elem across iota, masks,
    f32 build, bf16 cast) well under the scoped-VMEM budget."""
    requested = max(128, (int(requested) // 128) * 128)
    cap_pairs = _round_up(max(n_pairs, 1), 256)
    cap_vmem = (sizing_budget // 2) // (16 * n_pad)
    cap_vmem = max(256, (cap_vmem // 128) * 128)
    return max(128, min(requested, cap_pairs, cap_vmem))


def _pair_axis_semantics(grid_size: int):
    kind = _device_kind()
    if ("v7" in kind or "7x" in kind) and grid_size >= 2 and grid_size % 2 == 0:
        # v7x has 2 TensorCores per chip: shard pair tiles across both cores.
        return (pltpu.CORE_PARALLEL,)
    return ("parallel",)


# ----------------------------------------------------------------------------
# Pallas kernel: one fused lane-dense tile of pair displacements + distances.
# ----------------------------------------------------------------------------
def _make_pair_kernel(periodic: bool):
    def kernel(pos_ref, ii_ref, jj_ref, box_ref, out_ref):
        n_pad = pos_ref.shape[1]
        tile_p = ii_ref.shape[1]

        # Signed one-hot gather matrix: column p has +1 at row i[p], -1 at
        # row j[p].  Values are exactly 0/+-1, so the bf16 cast is exact.
        # TODO(synk): for very large N an O(P) direct lane gather (or a blocked
        # all-pairs broadcast-subtract on the rebuild path) would avoid this
        # O(N*P) construction; kept on the MXU one-hot path since it lowers
        # robustly for arbitrary N.
        atom_iota = lax.broadcasted_iota(jnp.int32, (n_pad, tile_p), 0)
        ii = ii_ref[...]                                      # [1, TILE_P]
        jj = jj_ref[...]                                      # [1, TILE_P]
        gather = ((atom_iota == ii).astype(jnp.float32)
                  - (atom_iota == jj).astype(jnp.float32)
                  ).astype(jnp.bfloat16)                      # [N_pad, TILE_P]

        # Positions keep full f32 accuracy via an exact 3-way bf16 split
        # (hi+mid+lo == pos exactly); each term is a plain bf16 MXU pass, so
        # this is 3 passes total vs. the >=6 of an f32xf32 HIGHEST dot, with a
        # half-size gather operand.  Rows 3..15 of the slab are zero.
        pos = pos_ref[...]                                    # [16, N_pad] f32
        p_hi = pos.astype(jnp.bfloat16)
        rem = pos - p_hi.astype(jnp.float32)
        p_mid = rem.astype(jnp.bfloat16)
        p_lo = (rem - p_mid.astype(jnp.float32)).astype(jnp.bfloat16)

        r16 = jnp.dot(p_hi, gather, preferred_element_type=jnp.float32)
        r16 = r16 + jnp.dot(p_mid, gather, preferred_element_type=jnp.float32)
        r16 = r16 + jnp.dot(p_lo, gather, preferred_element_type=jnp.float32)
        r8 = r16[0:8, :]            # rows 0..2 = pos_i - pos_j, rows 3..7 = 0

        if periodic:
            L = box_ref[...]        # [8, 1]; rows 0..2 = box lengths, rest = 1
            inv_L = 1.0 / L         # tiny [8,1]: turns per-lane divide into mul
            half = 0.5 * L
            # torch.remainder(r + L/2, L) - L/2 == r - L * floor((r + L/2)/L)
            r8 = r8 - L * jnp.floor((r8 + half) * inv_L)

        d = jnp.sqrt(jnp.sum(r8 * r8, axis=0, keepdims=True))  # [1, TILE_P]

        # Fused lane-dense output block: rows 0..2 = r_ij, row 3 = d_ij,
        # rows 4..7 = 0 -> one unmasked, lane-dense store per grid step.
        row = lax.broadcasted_iota(jnp.int32, (8, tile_p), 0)
        out_ref[...] = jnp.where(row == 3,
                                 jnp.broadcast_to(d, (8, tile_p)), r8)

    return kernel


@lru_cache(maxsize=None)
def _compiled_pair_fn(n_atoms, n_pad, n_pairs, p_pad, tile_p, periodic,
                      vmem_limit):
    """Builds (once per shape/flag key) the pallas_call + jitted wrapper."""
    grid = (p_pad // tile_p,)
    dim_sem = _pair_axis_semantics(grid[0])

    call = pl.pallas_call(
        _make_pair_kernel(bool(periodic)),
        out_shape=jax.ShapeDtypeStruct((8, p_pad), jnp.float32),
        grid=grid,
        in_specs=[
            pl.BlockSpec((16, n_pad), lambda p: (0, 0)),   # positions: resident
            pl.BlockSpec((1, tile_p), lambda p: (0, p)),   # i indices (lane-dense)
            pl.BlockSpec((1, tile_p), lambda p: (0, p)),   # j indices (lane-dense)
            pl.BlockSpec((8, 1), lambda p: (0, 0)),        # box lengths
        ],
        out_specs=pl.BlockSpec((8, tile_p), lambda p: (0, p)),
        compiler_params=pltpu.CompilerParams(
            dimension_semantics=dim_sem,
            vmem_limit_bytes=int(vmem_limit),
        ),
    )

    def fn(positions, ii_pad, jj_pad, box8):
        # Transposed, lane-dense positions slab: rows 0..2 = x/y/z over atoms,
        # rows 3..15 = 0 (16 rows = one bf16 sublane tile for the split LHS).
        pos16 = jnp.zeros((16, n_pad), jnp.float32).at[0:3, 0:n_atoms].set(
            positions.astype(jnp.float32).T)
        out = call(pos16, ii_pad, jj_pad, box8)
        # Padded tail columns (pairs >= n_pairs use atom 0 vs atom 0) are
        # sliced off here, on device, before anything downstream sees them.
        r_ij = out[0:3, :n_pairs].T            # (n_pairs, 3)
        d_ij = out[3:4, :n_pairs].T            # (n_pairs, 1)
        return r_ij, d_ij

    return jax.jit(fn)


def pair_displacements_pallas(positions, i_idx, j_idx, box_vectors, is_periodic,
                              tile_p=4096, index_cache=None, cache_name=None,
                              cache_token=None):
    """positions: (N,3) f32; i_idx/j_idx: (P,) int.
    Returns device arrays (r_ij (P,3) f32, d_ij (P,1) f32)."""
    positions = jnp.asarray(positions, jnp.float32)
    i_idx = np.asarray(i_idx, np.int32).reshape(-1)
    j_idx = np.asarray(j_idx, np.int32).reshape(-1)
    n_atoms = int(positions.shape[0])
    n_pairs = int(i_idx.shape[0])

    n_pad = max(128, _round_up(max(n_atoms, 1), 128))
    vmem_limit, sizing_budget = _vmem_params()
    tp = _choose_tile_p(n_pairs, n_pad, tile_p, sizing_budget)
    p_pad = _round_up(max(n_pairs, 1), tp)

    # Padded, lane-dense pair-index device arrays; cached across MD steps so
    # the steady-state Verlet reuse path does not re-upload them every call.
    ii_dev = jj_dev = None
    ckey = None
    if index_cache is not None and cache_name is not None:
        ckey = (cache_token, n_pairs, p_pad)
        entry = index_cache.get(cache_name)
        if entry is not None and entry[0] == ckey:
            ii_dev, jj_dev = entry[1], entry[2]
    if ii_dev is None:
        ii = np.zeros((1, p_pad), np.int32)
        jj = np.zeros((1, p_pad), np.int32)
        ii[0, :n_pairs] = i_idx
        jj[0, :n_pairs] = j_idx
        ii_dev = jnp.asarray(ii)
        jj_dev = jnp.asarray(jj)
        if index_cache is not None and cache_name is not None:
            index_cache[cache_name] = (ckey, ii_dev, jj_dev)

    box8 = np.ones((8, 1), np.float32)
    if is_periodic:
        bv = np.asarray(box_vectors, np.float32)
        box8[0, 0] = bv[0, 0]
        box8[1, 0] = bv[1, 1]
        box8[2, 0] = bv[2, 2]
    box8 = jnp.asarray(box8)

    fn = _compiled_pair_fn(n_atoms, n_pad, n_pairs, p_pad, tp,
                           bool(is_periodic), int(vmem_limit))
    return fn(positions, ii_dev, jj_dev, box8)


# ----------------------------------------------------------------------------
# NeighborlistVerletNsq forward semantics (Verlet bookkeeping is host-side).
# ----------------------------------------------------------------------------
class NeighborlistVerletNsq:
    def __init__(self, cutoff, skin, only_unique_pairs=False,
                 use_pallas=True, tile_p=4096):
        self.cutoff = float(cutoff)
        self.skin = float(skin)
        self.half_skin = 0.5 * float(skin)
        self.cutoff_plus_skin = float(cutoff) + float(skin)
        self.only_unique_pairs = bool(only_unique_pairs)
        self.use_pallas = bool(use_pallas)
        self.tile_p = int(tile_p)
        self.indices = np.zeros((0,), np.int64)
        self.i_pairs = np.zeros((0,), np.int32)
        self.j_pairs = np.zeros((0,), np.int32)
        self.positions_old = np.zeros((0, 3), np.float32)
        self.nlist_pairs = np.zeros((2, 0), np.int32)
        self.builds = 0
        self.box_vectors = np.zeros((3, 3), np.float32)
        self._idx_cache = {}

    # --- OrthogonalDisplacementFunction (numpy path, used for the O(N) check
    # --- and as the non-Pallas reference) ------------------------------------
    @staticmethod
    def _displacement_np(coord_i, coord_j, box_vectors, is_periodic):
        r_ij = np.asarray(coord_i, np.float32) - np.asarray(coord_j, np.float32)
        if is_periodic:
            bv = np.asarray(box_vectors, np.float32)
            L = np.array([bv[0, 0], bv[1, 1], bv[2, 2]], np.float32)
            r_ij = r_ij - L * np.floor((r_ij + 0.5 * L) / L)
        d_ij = np.linalg.norm(r_ij, axis=1, keepdims=True).astype(np.float32)
        return r_ij, d_ij

    def _pair_displacement(self, positions, i_idx, j_idx, box_vectors,
                           is_periodic, cache_name=None, cache_token=None):
        if self.use_pallas:
            r_dev, d_dev = pair_displacements_pallas(
                positions, i_idx, j_idx, box_vectors, is_periodic,
                tile_p=self.tile_p, index_cache=self._idx_cache,
                cache_name=cache_name, cache_token=cache_token)
            return np.asarray(r_dev), np.asarray(d_dev)
        pos = np.asarray(positions, np.float32)
        return self._displacement_np(pos[i_idx], pos[j_idx],
                                     box_vectors, is_periodic)

    # --- Verlet bookkeeping ---------------------------------------------------
    def _init_pairs(self, n):
        i_pairs, j_pairs = np.triu_indices(n, 1)
        self.indices = np.arange(n)
        self.i_pairs = i_pairs.astype(np.int32)
        self.j_pairs = j_pairs.astype(np.int32)

    def _check_nlist(self, positions, box_vectors, is_periodic):
        _, d_ij = self._displacement_np(self.positions_old,
                                        np.asarray(positions, np.float32),
                                        box_vectors, is_periodic)
        return bool(np.any(d_ij > self.half_skin))

    def _build_nlist(self, positions, box_vectors, is_periodic):
        r_ij, d_ij = self._pair_displacement(
            positions, self.i_pairs, self.j_pairs, box_vectors, is_periodic,
            cache_name="all", cache_token=int(self.indices.shape[0]))
        in_cutoff = d_ij[:, 0] < self.cutoff_plus_skin
        self.nlist_pairs = np.stack([self.i_pairs[in_cutoff],
                                     self.j_pairs[in_cutoff]])
        self.builds += 1
        return r_ij[in_cutoff], d_ij[in_cutoff]

    @staticmethod
    def _copy_to_nonunique(pairs, d_ij, r_ij, total_unique_pairs):
        t = int(total_unique_pairs)
        r_full = np.zeros((2 * t, 3), dtype=r_ij.dtype)
        d_full = np.zeros((2 * t, 1), dtype=d_ij.dtype)
        r_full[:t] = r_ij
        r_full[t:] = -r_ij
        d_full[:t] = d_ij
        d_full[t:] = d_ij
        pairs_full = np.zeros((2, 2 * t), dtype=np.int64)
        pairs_full[0, :t] = pairs[0]
        pairs_full[1, :t] = pairs[1]
        pairs_full[0, t:] = pairs[1]
        pairs_full[1, t:] = pairs[0]
        return pairs_full, d_full, r_full

    def forward(self, data: NNPInput) -> PairlistData:
        positions = np.asarray(data.positions, np.float32)
        n = np.asarray(data.atomic_subsystem_indices).shape[0]
        is_periodic = bool(data.is_periodic)
        box_vectors = np.asarray(data.box_vectors, np.float32)

        if self.builds == 0:
            self.box_vectors = box_vectors
        box_changed = bool(np.any(self.box_vectors != box_vectors))

        if self.indices.shape[0] != n:
            self.box_vectors = box_vectors
            self.positions_old = positions
            self._init_pairs(n)
            r_ij, d_ij = self._build_nlist(positions, box_vectors, is_periodic)
        elif box_changed:
            self.box_vectors = box_vectors
            self.positions_old = positions
            r_ij, d_ij = self._build_nlist(positions, box_vectors, is_periodic)
        elif self._check_nlist(positions, box_vectors, is_periodic):
            self.positions_old = positions
            r_ij, d_ij = self._build_nlist(positions, box_vectors, is_periodic)
        else:
            r_ij, d_ij = self._pair_displacement(
                positions, self.nlist_pairs[0], self.nlist_pairs[1],
                box_vectors, is_periodic,
                cache_name="nlist", cache_token=int(self.builds))

        in_cutoff = d_ij[:, 0] <= self.cutoff
        # TODO(synk): boolean compaction produces a data-dependent output shape;
        # no static-shape Pallas equivalent, so it stays host-side in numpy.
        if self.only_unique_pairs:
            pairs = np.stack([self.nlist_pairs[0][in_cutoff],
                              self.nlist_pairs[1][in_cutoff]]).astype(np.int64)
            return PairlistData(pairs, d_ij[in_cutoff], r_ij[in_cutoff])
        pairs_full, d_full, r_full = self._copy_to_nonunique(
            self.nlist_pairs[:, in_cutoff], d_ij[in_cutoff], r_ij[in_cutoff],
            int(in_cutoff.sum()))
        return PairlistData(pairs_full, d_full, r_full)

    __call__ = forward


# ----------------------------------------------------------------------------
# Deterministic smoke test + verification against the pure-numpy path.
# ----------------------------------------------------------------------------
if __name__ == "__main__":
    key = jax.random.PRNGKey(0)
    k0, k1 = jax.random.split(key, 2)

    n_atoms = 16
    positions0 = jax.random.uniform(k0, (n_atoms, 3), dtype=jnp.float32)
    subsys = np.zeros((n_atoms,), np.int32)
    cutoff, skin = 0.4, 0.1
    box = np.eye(3, dtype=np.float32)  # 1.0 x 1.0 x 1.0 orthogonal box

    # Direct kernel invocation + explicit block, verified against numpy.
    i0, j0 = np.triu_indices(n_atoms, 1)
    r_dev, d_dev = pair_displacements_pallas(positions0, i0, j0, box, True)
    jax.block_until_ready((r_dev, d_dev))
    pos_np = np.asarray(positions0, np.float32)
    r_ref, d_ref = NeighborlistVerletNsq._displacement_np(
        pos_np[i0], pos_np[j0], box, True)
    np.testing.assert_allclose(np.asarray(r_dev), r_ref, rtol=1e-5, atol=1e-6)
    np.testing.assert_allclose(np.asarray(d_dev), d_ref, rtol=1e-5, atol=1e-6)

    def run_sequence(is_periodic, only_unique_pairs):
        nl_pallas = NeighborlistVerletNsq(cutoff, skin, only_unique_pairs,
                                          use_pallas=True)
        nl_ref = NeighborlistVerletNsq(cutoff, skin, only_unique_pairs,
                                       use_pallas=False)

        # step 0: fresh build; step 1: tiny jitter -> reuse Verlet list;
        # step 2: large move on atom 0 -> displacement > half_skin -> rebuild.
        jitter = 0.01 * (jax.random.uniform(k1, (n_atoms, 3),
                                            dtype=jnp.float32) - 0.5)
        positions1 = positions0 + jitter
        positions2 = positions1.at[0].add(
            jnp.array([0.2, 0.0, 0.0], jnp.float32))

        for step, pos in enumerate((positions0, positions1, positions2)):
            data = NNPInput(positions=pos, atomic_subsystem_indices=subsys,
                            box_vectors=box, is_periodic=is_periodic)
            out = nl_pallas.forward(data)
            ref = nl_ref.forward(data)
            assert out.pair_indices.shape == ref.pair_indices.shape, (
                step, out.pair_indices.shape, ref.pair_indices.shape)
            np.testing.assert_array_equal(out.pair_indices, ref.pair_indices)
            np.testing.assert_allclose(out.r_ij, ref.r_ij, rtol=1e-5, atol=1e-6)
            np.testing.assert_allclose(out.d_ij, ref.d_ij, rtol=1e-5, atol=1e-6)
        assert nl_pallas.builds == nl_ref.builds == 2, (nl_pallas.builds,
                                                        nl_ref.builds)

    run_sequence(is_periodic=False, only_unique_pairs=False)
    run_sequence(is_periodic=True, only_unique_pairs=True)

    print("KERNEL_OK")
</pallas_src>

<mosaic_0001>
module attributes {stable_mosaic.version = 11 : i64} {
  func.func @kernel(%arg0: i32, %arg1: memref<16x128xf32, #tpu.memory_space<vmem>>, %arg2: memref<1x256xi32, #tpu.memory_space<vmem>>, %arg3: memref<1x256xi32, #tpu.memory_space<vmem>>, %arg4: memref<8x1xf32, #tpu.memory_space<vmem>>, %arg5: memref<8x256xf32, #tpu.memory_space<vmem>>) attributes {dimension_semantics = [#tpu.dimension_semantics<parallel>], iteration_bounds = array<i64: 1>, scalar_prefetch = 0 : i64, scratch_operands = 0 : i64, tpu.core_type = #tpu.core_type<tc>, window_params = [{pipeline_mode = #tpu.pipeline_mode<synchronous>, transform_indices = @transform_0, window_bounds = array<i64: 16, 128>}, {transform_indices = @transform_1, window_bounds = array<i64: 1, 256>}, {transform_indices = @transform_2, window_bounds = array<i64: 1, 256>}, {pipeline_mode = #tpu.pipeline_mode<synchronous>, transform_indices = @transform_3, window_bounds = array<i64: 8, 1>}, {transform_indices = @transform_4, window_bounds = array<i64: 8, 256>}]} {
    %0 = tpu.iota {dimensions = array<i32: 0>} : vector<128x256xi32>
    %c0 = arith.constant 0 : index
    %c0_0 = arith.constant 0 : index
    %1 = vector.load %arg2[%c0, %c0_0] : memref<1x256xi32, #tpu.memory_space<vmem>>, vector<1x256xi32>
    %c0_1 = arith.constant 0 : index
    %c0_2 = arith.constant 0 : index
    %2 = vector.load %arg3[%c0_1, %c0_2] : memref<1x256xi32, #tpu.memory_space<vmem>>, vector<1x256xi32>
    %3 = vector.broadcast %1 : vector<1x256xi32> to vector<128x256xi32>
    %4 = arith.cmpi eq, %0, %3 : vector<128x256xi32>
    %5 = arith.extui %4 : vector<128x256xi1> to vector<128x256xi32>
    %6 = arith.sitofp %5 : vector<128x256xi32> to vector<128x256xf32>
    %7 = vector.broadcast %2 : vector<1x256xi32> to vector<128x256xi32>
    %8 = arith.cmpi eq, %0, %7 : vector<128x256xi32>
    %9 = arith.extui %8 : vector<128x256xi1> to vector<128x256xi32>
    %10 = arith.sitofp %9 : vector<128x256xi32> to vector<128x256xf32>
    %11 = arith.subf %6, %10 : vector<128x256xf32>
    %12 = arith.truncf %11 : vector<128x256xf32> to vector<128x256xbf16>
    %c0_3 = arith.constant 0 : index
    %c0_4 = arith.constant 0 : index
    %13 = vector.load %arg1[%c0_3, %c0_4] : memref<16x128xf32, #tpu.memory_space<vmem>>, vector<16x128xf32>
    %14 = arith.truncf %13 : vector<16x128xf32> to vector<16x128xbf16>
    %15 = arith.extf %14 : vector<16x128xbf16> to vector<16x128xf32>
    %16 = arith.subf %13, %15 : vector<16x128xf32>
    %17 = arith.truncf %16 : vector<16x128xf32> to vector<16x128xbf16>
    %18 = arith.extf %17 : vector<16x128xbf16> to vector<16x128xf32>
    %19 = arith.subf %16, %18 : vector<16x128xf32>
    %20 = arith.truncf %19 : vector<16x128xf32> to vector<16x128xbf16>
    %cst = arith.constant dense<0.000000e+00> : vector<16x256xf32>
    %21 = tpu.matmul %14, %12, %cst {dimension_numbers = #tpu.dot_dimension_numbers<[1], [0], [0], [1], [0, 0, 1, 1], [], []>} : vector<16x128xbf16>, vector<128x256xbf16>, vector<16x256xf32> -> vector<16x256xf32>
    %cst_5 = arith.constant dense<0.000000e+00> : vector<16x256xf32>
    %22 = tpu.matmul %17, %12, %cst_5 {dimension_numbers = #tpu.dot_dimension_numbers<[1], [0], [0], [1], [0, 0, 1, 1], [], []>} : vector<16x128xbf16>, vector<128x256xbf16>, vector<16x256xf32> -> vector<16x256xf32>
    %23 = arith.addf %21, %22 : vector<16x256xf32>
    %cst_6 = arith.constant dense<0.000000e+00> : vector<16x256xf32>
    %24 = tpu.matmul %20, %12, %cst_6 {dimension_numbers = #tpu.dot_dimension_numbers<[1], [0], [0], [1], [0, 0, 1, 1], [], []>} : vector<16x128xbf16>, vector<128x256xbf16>, vector<16x256xf32> -> vector<16x256xf32>
    %25 = arith.addf %23, %24 : vector<16x256xf32>
    %26 = vector.extract_strided_slice %25 {offsets = [0, 0], sizes = [8, 256], strides = [1, 1]} : vector<16x256xf32> to vector<8x256xf32>
    %c0_7 = arith.constant 0 : index
    %c0_8 = arith.constant 0 : index
    %27 = vector.load %arg4[%c0_7, %c0_8] : memref<8x1xf32, #tpu.memory_space<vmem>>, vector<8x1xf32>
    %cst_9 = arith.constant 1.000000e+00 : f32
    %28 = vector.broadcast %cst_9 : f32 to vector<8x1xf32>
    %29 = arith.divf %28, %27 : vector<8x1xf32>
    %cst_10 = arith.constant 5.000000e-01 : f32
    %30 = vector.broadcast %cst_10 : f32 to vector<8x1xf32>
    %31 = arith.mulf %30, %27 : vector<8x1xf32>
    %32 = vector.broadcast %31 : vector<8x1xf32> to vector<8x256xf32>
    %33 = arith.addf %26, %32 : vector<8x256xf32>
    %34 = vector.broadcast %29 : vector<8x1xf32> to vector<8x256xf32>
    %35 = arith.mulf %33, %34 : vector<8x256xf32>
    %36 = math.floor %35 : vector<8x256xf32>
    %37 = vector.broadcast %27 : vector<8x1xf32> to vector<8x256xf32>
    %38 = arith.mulf %37, %36 : vector<8x256xf32>
    %39 = arith.subf %26, %38 : vector<8x256xf32>
    %40 = arith.mulf %39, %39 : vector<8x256xf32>
    %cst_11 = arith.constant dense<0.000000e+00> : vector<256xf32>
    %41 = vector.multi_reduction <add>, %40, %cst_11 [0] : vector<8x256xf32> to vector<256xf32>
    %42 = vector.shape_cast %41 : vector<256xf32> to vector<1x256xf32>
    %43 = math.sqrt %42 : vector<1x256xf32>
    %44 = tpu.iota {dimensions = array<i32: 0>} : vector<8x256xi32>
    %c3_i32 = arith.constant 3 : i32
    %45 = vector.broadcast %c3_i32 : i32 to vector<8x256xi32>
    %46 = arith.cmpi eq, %44, %45 : vector<8x256xi32>
    %47 = vector.shape_cast %43 : vector<1x256xf32> to vector<1x256xf32>
    %48 = vector.broadcast %47 : vector<1x256xf32> to vector<8x256xf32>
    %49 = arith.select %46, %48, %39 : vector<8x256xi1>, vector<8x256xf32>
    %c0_12 = arith.constant 0 : index
    %c0_13 = arith.constant 0 : index
    %50 = vector.load %arg5[%c0_12, %c0_13] : memref<8x256xf32, #tpu.memory_space<vmem>>, vector<8x256xf32>
    tpu.vector_store %arg5[%c0_12, %c0_13], %49 {strides = array<i32>} : memref<8x256xf32, #tpu.memory_space<vmem>>, vector<8x256xf32>,
    return
  }
  func.func @transform_0(%arg0: i32) -> (i32, i32) {
    %c0_i32 = arith.constant 0 : i32
    %c0_i32_0 = arith.constant 0 : i32
    %c0_i32_1 = arith.constant 0 : i32
    return %c0_i32, %c0_i32_0 : i32, i32
  }
  func.func @transform_1(%arg0: i32) -> (i32, i32) {
    %c0_i32 = arith.constant 0 : i32
    %c0_i32_0 = arith.constant 0 : i32
    return %c0_i32, %arg0 : i32, i32
  }
  func.func @transform_2(%arg0: i32) -> (i32, i32) {
    %c0_i32 = arith.constant 0 : i32
    %c0_i32_0 = arith.constant 0 : i32
    return %c0_i32, %arg0 : i32, i32
  }
  func.func @transform_3(%arg0: i32) -> (i32, i32) {
    %c0_i32 = arith.constant 0 : i32
    %c0_i32_0 = arith.constant 0 : i32
    %c0_i32_1 = arith.constant 0 : i32
    return %c0_i32, %c0_i32_0 : i32, i32
  }
  func.func @transform_4(%arg0: i32) -> (i32, i32) {
    %c0_i32 = arith.constant 0 : i32
    %c0_i32_0 = arith.constant 0 : i32
    return %c0_i32, %arg0 : i32, i32
  }
}

</mosaic_0001>

<llo_original>
// kernel: fn.1
$region0: #{fn.1}
  #allocation0 [shape = 'u32[]', space=smem, size = 0x4, offset = 0x4, fixed_abs, tag = 'smem constant byte address 0x4 - core index']
  #allocation1 [shape = 'u32[144,128]{1,0:T(1,128)}', space=vmem, size = 0x12000, scoped, tag = 'internal scratch']
  %s0 = inlined_call_operand.vmem [shape: f32[16,128], index: 0, kind: input, shape index: {}]
  %s1 = inlined_call_operand.vmem [shape: s32[1,256], index: 1, kind: input, shape index: {}]
  %s2 = inlined_call_operand.vmem [shape: s32[1,256], index: 2, kind: input, shape index: {}]
  %s3 = inlined_call_operand.vmem [shape: f32[8,1], index: 3, kind: input, shape index: {}]
  %s4 = inlined_call_operand.vmem [shape: f32[8,256], index: 4, kind: output, shape index: {}]
  %s5 = sld [smem:[#allocation0]]
  $region26: #{fn.1} parent=0
    _
  %s7 = ssub.s32 1, %s5
  %s8 = scalar_select 0, %s7, %s5
  // Predicated region
  $region2: #{fn.1} parent=0 // pred_check
    _
  $region3: #{fn.1} parent=0 // pred_check_branch
    %10 = sbr.rel (0) target = $region5
  $region4: #{fn.1} parent=0 // pred_region
    _
  $region5: #{fn.1} parent=0 // pred_fallthru
    _
  // Predicated region
  $region6: #{fn.1} parent=0 // pred_check
    _
  $region7: #{fn.1} parent=0 // pred_check_branch
    %12 = sbr.rel (0) target = $region9
  $region8: #{fn.1} parent=0 // pred_region
    _
  $region9: #{fn.1} parent=0 // pred_fallthru
    _
  // Predicated region
  $region10: #{fn.1} parent=0 // pred_check
    _
  $region11: #{fn.1} parent=0 // pred_check_branch
    %14 = sbr.rel (0) target = $region13
  $region12: #{fn.1} parent=0 // pred_region
    _
  $region13: #{fn.1} parent=0 // pred_fallthru
    _
  // Predicated region
  $region14: #{fn.1} parent=0 // pred_check
    _
  $region15: #{fn.1} parent=0 // pred_check_branch
    %16 = sbr.rel (0) target = $region17
  $region16: #{fn.1} parent=0 // pred_region
    _
  $region17: #{fn.1} parent=0 // pred_fallthru
    _
  %v18 = vlaneseq
  %v19 = vshrl.u32 %v18, 7
  %v20 = vadd.s32 %v19, 8
  %v21 = vadd.s32 %v19, 16
  %v22 = vadd.s32 %v19, 24
  %v23 = vadd.s32 %v19, 32
  %v24 = vadd.s32 %v19, 40
  %v25 = vadd.s32 %v19, 48
  %v26 = vadd.s32 %v19, 56
  %v27 = vadd.s32 %v19, 64
  %v28 = vadd.s32 %v19, 72
  %v29 = vadd.s32 %v19, 80
  %v30 = vadd.s32 %v19, 88
  %v31 = vadd.s32 %v19, 96
  %v32 = vadd.s32 %v19, 104
  %v33 = vadd.s32 %v19, 112
  %v34 = vadd.s32 %v19, 120
  %v35 = vld [vmem:[%s1] sm:$0x3]
  %v36 = vld [vmem:[%s2] sm:$0x3]
  %v37 = vlaneseq
  %v38 = vshrl.u32 %v37, 7
  %v39 = vsub.s32 0, %v38
  %v40 = vrot.slane %v35, %v39
  %v41 = vlaneseq
  %v42 = vshrl.u32 %v41, 7
  %v43 = vsub.s32 1, %v42
  %v44 = vrot.slane %v35, %v43
  %vm45 = vcmp.eq.s32.totalorder %v19, %v40
  %vm46 = vcmp.eq.s32.totalorder %v19, %v44
  %vm47 = vcmp.eq.s32.totalorder %v20, %v40
  %vm48 = vcmp.eq.s32.totalorder %v20, %v44
  %vm49 = vcmp.eq.s32.totalorder %v21, %v40
  %vm50 = vcmp.eq.s32.totalorder %v21, %v44
  %vm51 = vcmp.eq.s32.totalorder %v22, %v40
  %vm52 = vcmp.eq.s32.totalorder %v22, %v44
  %vm53 = vcmp.eq.s32.totalorder %v23, %v40
  %vm54 = vcmp.eq.s32.totalorder %v23, %v44
  %vm55 = vcmp.eq.s32.totalorder %v24, %v40
  %vm56 = vcmp.eq.s32.totalorder %v24, %v44
  %vm57 = vcmp.eq.s32.totalorder %v25, %v40
  %vm58 = vcmp.eq.s32.totalorder %v25, %v44
  %vm59 = vcmp.eq.s32.totalorder %v26, %v40
  %vm60 = vcmp.eq.s32.totalorder %v26, %v44
  %vm61 = vcmp.eq.s32.totalorder %v27, %v40
  %vm62 = vcmp.eq.s32.totalorder %v27, %v44
  %vm63 = vcmp.eq.s32.totalorder %v28, %v40
  %vm64 = vcmp.eq.s32.totalorder %v28, %v44
  %vm65 = vcmp.eq.s32.totalorder %v29, %v40
  %vm66 = vcmp.eq.s32.totalorder %v29, %v44
  %vm67 = vcmp.eq.s32.totalorder %v30, %v40
  %vm68 = vcmp.eq.s32.totalorder %v30, %v44
  %vm69 = vcmp.eq.s32.totalorder %v31, %v40
  %vm70 = vcmp.eq.s32.totalorder %v31, %v44
  %vm71 = vcmp.eq.s32.totalorder %v32, %v40
  %vm72 = vcmp.eq.s32.totalorder %v32, %v44
  %vm73 = vcmp.eq.s32.totalorder %v33, %v40
  %vm74 = vcmp.eq.s32.totalorder %v33, %v44
  %vm75 = vcmp.eq.s32.totalorder %v34, %v40
  %vm76 = vcmp.eq.s32.totalorder %v34, %v44
  %v77 = vsel %vm45, 1, 0
  %v78 = vsel %vm46, 1, 0
  %v79 = vsel %vm47, 1, 0
  %v80 = vsel %vm48, 1, 0
  %v81 = vsel %vm49, 1, 0
  %v82 = vsel %vm50, 1, 0
  %v83 = vsel %vm51, 1, 0
  %v84 = vsel %vm52, 1, 0
  %v85 = vsel %vm53, 1, 0
  %v86 = vsel %vm54, 1, 0
  %v87 = vsel %vm55, 1, 0
  %v88 = vsel %vm56, 1, 0
  %v89 = vsel %vm57, 1, 0
  %v90 = vsel %vm58, 1, 0
  %v91 = vsel %vm59, 1, 0
  %v92 = vsel %vm60, 1, 0
  %v93 = vsel %vm61, 1, 0
  %v94 = vsel %vm62, 1, 0
  %v95 = vsel %vm63, 1, 0
  %v96 = vsel %vm64, 1, 0
  %v97 = vsel %vm65, 1, 0
  %v98 = vsel %vm66, 1, 0
  %v99 = vsel %vm67, 1, 0
  %v100 = vsel %vm68, 1, 0
  %v101 = vsel %vm69, 1, 0
  %v102 = vsel %vm70, 1, 0
  %v103 = vsel %vm71, 1, 0
  %v104 = vsel %vm72, 1, 0
  %v105 = vsel %vm73, 1, 0
  %v106 = vsel %vm74, 1, 0
  %v107 = vsel %vm75, 1, 0
  %v108 = vsel %vm76, 1, 0
  %v109 = vcvt.s32.f32 %v77
  %v110 = vcvt.s32.f32 %v78
  %v111 = vcvt.s32.f32 %v79
  %v112 = vcvt.s32.f32 %v80
  %v113 = vcvt.s32.f32 %v81
  %v114 = vcvt.s32.f32 %v82
  %v115 = vcvt.s32.f32 %v83
  %v116 = vcvt.s32.f32 %v84
  %v117 = vcvt.s32.f32 %v85
  %v118 = vcvt.s32.f32 %v86
  %v119 = vcvt.s32.f32 %v87
  %v120 = vcvt.s32.f32 %v88
  %v121 = vcvt.s32.f32 %v89
  %v122 = vcvt.s32.f32 %v90
  %v123 = vcvt.s32.f32 %v91
  %v124 = vcvt.s32.f32 %v92
  %v125 = vcvt.s32.f32 %v93
  %v126 = vcvt.s32.f32 %v94
  %v127 = vcvt.s32.f32 %v95
  %v128 = vcvt.s32.f32 %v96
  %v129 = vcvt.s32.f32 %v97
  %v130 = vcvt.s32.f32 %v98
  %v131 = vcvt.s32.f32 %v99
  %v132 = vcvt.s32.f32 %v100
  %v133 = vcvt.s32.f32 %v101
  %v134 = vcvt.s32.f32 %v102
  %v135 = vcvt.s32.f32 %v103
  %v136 = vcvt.s32.f32 %v104
  %v137 = vcvt.s32.f32 %v105
  %v138 = vcvt.s32.f32 %v106
  %v139 = vcvt.s32.f32 %v107
  %v140 = vcvt.s32.f32 %v108
  %v141 = vlaneseq
  %v142 = vshrl.u32 %v141, 7
  %v143 = vsub.s32 0, %v142
  %v144 = vrot.slane %v36, %v143
  %v145 = vlaneseq
  %v146 = vshrl.u32 %v145, 7
  %v147 = vsub.s32 1, %v146
  %v148 = vrot.slane %v36, %v147
  %vm149 = vcmp.eq.s32.totalorder %v19, %v144
  %vm150 = vcmp.eq.s32.totalorder %v19, %v148
  %vm151 = vcmp.eq.s32.totalorder %v20, %v144
  %vm152 = vcmp.eq.s32.totalorder %v20, %v148
  %vm153 = vcmp.eq.s32.totalorder %v21, %v144
  %vm154 = vcmp.eq.s32.totalorder %v21, %v148
  %vm155 = vcmp.eq.s32.totalorder %v22, %v144
  %vm156 = vcmp.eq.s32.totalorder %v22, %v148
  %vm157 = vcmp.eq.s32.totalorder %v23, %v144
  %vm158 = vcmp.eq.s32.totalorder %v23, %v148
  %vm159 = vcmp.eq.s32.totalorder %v24, %v144
  %vm160 = vcmp.eq.s32.totalorder %v24, %v148
  %vm161 = vcmp.eq.s32.totalorder %v25, %v144
  %vm162 = vcmp.eq.s32.totalorder %v25, %v148
  %vm163 = vcmp.eq.s32.totalorder %v26, %v144
  %vm164 = vcmp.eq.s32.totalorder %v26, %v148
  %vm165 = vcmp.eq.s32.totalorder %v27, %v144
  %vm166 = vcmp.eq.s32.totalorder %v27, %v148
  %vm167 = vcmp.eq.s32.totalorder %v28, %v144
  %vm168 = vcmp.eq.s32.totalorder %v28, %v148
  %vm169 = vcmp.eq.s32.totalorder %v29, %v144
  %vm170 = vcmp.eq.s32.totalorder %v29, %v148
  %vm171 = vcmp.eq.s32.totalorder %v30, %v144
  %vm172 = vcmp.eq.s32.totalorder %v30, %v148
  %vm173 = vcmp.eq.s32.totalorder %v31, %v144
  %vm174 = vcmp.eq.s32.totalorder %v31, %v148
  %vm175 = vcmp.eq.s32.totalorder %v32, %v144
  %vm176 = vcmp.eq.s32.totalorder %v32, %v148
  %vm177 = vcmp.eq.s32.totalorder %v33, %v144
  %vm178 = vcmp.eq.s32.totalorder %v33, %v148
  %vm179 = vcmp.eq.s32.totalorder %v34, %v144
  %vm180 = vcmp.eq.s32.totalorder %v34, %v148
  %v181 = vsel %vm149, 1, 0
  %v182 = vsel %vm150, 1, 0
  %v183 = vsel %vm151, 1, 0
  %v184 = vsel %vm152, 1, 0
  %v185 = vsel %vm153, 1, 0
  %v186 = vsel %vm154, 1, 0
  %v187 = vsel %vm155, 1, 0
  %v188 = vsel %vm156, 1, 0
  %v189 = vsel %vm157, 1, 0
  %v190 = vsel %vm158, 1, 0
  %v191 = vsel %vm159, 1, 0
  %v192 = vsel %vm160, 1, 0
  %v193 = vsel %vm161, 1, 0
  %v194 = vsel %vm162, 1, 0
  %v195 = vsel %vm163, 1, 0
  %v196 = vsel %vm164, 1, 0
  %v197 = vsel %vm165, 1, 0
  %v198 = vsel %vm166, 1, 0
  %v199 = vsel %vm167, 1, 0
  %v200 = vsel %vm168, 1, 0
  %v201 = vsel %vm169, 1, 0
  %v202 = vsel %vm170, 1, 0
  %v203 = vsel %vm171, 1, 0
  %v204 = vsel %vm172, 1, 0
  %v205 = vsel %vm173, 1, 0
  %v206 = vsel %vm174, 1, 0
  %v207 = vsel %vm175, 1, 0
  %v208 = vsel %vm176, 1, 0
  %v209 = vsel %vm177, 1, 0
  %v210 = vsel %vm178, 1, 0
  %v211 = vsel %vm179, 1, 0
  %v212 = vsel %vm180, 1, 0
  %v213 = vcvt.s32.f32 %v181
  %v214 = vcvt.s32.f32 %v182
  %v215 = vcvt.s32.f32 %v183
  %v216 = vcvt.s32.f32 %v184
  %v217 = vcvt.s32.f32 %v185
  %v218 = vcvt.s32.f32 %v186
  %v219 = vcvt.s32.f32 %v187
  %v220 = vcvt.s32.f32 %v188
  %v221 = vcvt.s32.f32 %v189
  %v222 = vcvt.s32.f32 %v190
  %v223 = vcvt.s32.f32 %v191
  %v224 = vcvt.s32.f32 %v192
  %v225 = vcvt.s32.f32 %v193
  %v226 = vcvt.s32.f32 %v194
  %v227 = vcvt.s32.f32 %v195
  %v228 = vcvt.s32.f32 %v196
  %v229 = vcvt.s32.f32 %v197
  %v230 = vcvt.s32.f32 %v198
  %v231 = vcvt.s32.f32 %v199
  %v232 = vcvt.s32.f32 %v200
  %v233 = vcvt.s32.f32 %v201
  %v234 = vcvt.s32.f32 %v202
  %v235 = vcvt.s32.f32 %v203
  %v236 = vcvt.s32.f32 %v204
  %v237 = vcvt.s32.f32 %v205
  %v238 = vcvt.s32.f32 %v206
  %v239 = vcvt.s32.f32 %v207
  %v240 = vcvt.s32.f32 %v208
  %v241 = vcvt.s32.f32 %v209
  %v242 = vcvt.s32.f32 %v210
  %v243 = vcvt.s32.f32 %v211
  %v244 = vcvt.s32.f32 %v212
  %v245 = vsub.f32 %v109, %v213
  %v246 = vsub.f32 %v110, %v214
  %v247 = vsub.f32 %v111, %v215
  %v248 = vsub.f32 %v112, %v216
  %v249 = vsub.f32 %v113, %v217
  %v250 = vsub.f32 %v114, %v218
  %v251 = vsub.f32 %v115, %v219
  %v252 = vsub.f32 %v116, %v220
  %v253 = vsub.f32 %v117, %v221
  %v254 = vsub.f32 %v118, %v222
  %v255 = vsub.f32 %v119, %v223
  %v256 = vsub.f32 %v120, %v224
  %v257 = vsub.f32 %v121, %v225
  %v258 = vsub.f32 %v122, %v226
  %v259 = vsub.f32 %v123, %v227
  %v260 = vsub.f32 %v124, %v228
  %v261 = vsub.f32 %v125, %v229
  %v262 = vsub.f32 %v126, %v230
  %v263 = vsub.f32 %v127, %v231
  %v264 = vsub.f32 %v128, %v232
  %v265 = vsub.f32 %v129, %v233
  %v266 = vsub.f32 %v130, %v234
  %v267 = vsub.f32 %v131, %v235
  %v268 = vsub.f32 %v132, %v236
  %v269 = vsub.f32 %v133, %v237
  %v270 = vsub.f32 %v134, %v238
  %v271 = vsub.f32 %v135, %v239
  %v272 = vsub.f32 %v136, %v240
  %v273 = vsub.f32 %v137, %v241
  %v274 = vsub.f32 %v138, %v242
  %v275 = vsub.f32 %v139, %v243
  %v276 = vsub.f32 %v140, %v244
  %v277 = vpack.c.bf16 %v247, %v245
  %v278 = vpack.c.bf16 %v248, %v246
  %v279 = vpack.c.bf16 %v251, %v249
  %v280 = vpack.c.bf16 %v252, %v250
  %v281 = vpack.c.bf16 %v255, %v253
  %v282 = vpack.c.bf16 %v256, %v254
  %v283 = vpack.c.bf16 %v259, %v257
  %v284 = vpack.c.bf16 %v260, %v258
  %v285 = vpack.c.bf16 %v263, %v261
  %v286 = vpack.c.bf16 %v264, %v262
  %v287 = vpack.c.bf16 %v267, %v265
  %v288 = vpack.c.bf16 %v268, %v266
  %v289 = vpack.c.bf16 %v271, %v269
  %v290 = vpack.c.bf16 %v272, %v270
  %v291 = vpack.c.bf16 %v275, %v273
  %v292 = vpack.c.bf16 %v276, %v274
  %v293 = vld [vmem:[%s0] sm:$0xff]
  %v294 = vld [vmem:[%s0 + $0x8] sm:$0xff]
  %v295 = vpack.c.bf16 %v294, %v293
  %v296 = vunpack.c.l.bf16 %v295
  %v297 = vunpack.c.h.bf16 %v295
  %v298 = vsub.f32 %v293, %v296
  %v299 = vsub.f32 %v294, %v297
  %v300 = vpack.c.bf16 %v299, %v298
  %v301 = vunpack.c.l.bf16 %v300
  %v302 = vunpack.c.h.bf16 %v300
  %v303 = vsub.f32 %v298, %v301
  %v304 = vsub.f32 %v299, %v302
  %v305 = vpack.c.bf16 %v304, %v303
  %306 = vmatprep.subr.bf16.mxu0 %v292
  %307 = vmatpush1.bf16.msra.mxu0 %v291
  %308 = vmatprep.subr.bf16.mxu0 %v290
  %309 = vmatpush1.bf16.msra.mxu0 %v289
  %310 = vmatprep.subr.bf16.mxu0 %v288
  %311 = vmatpush1.bf16.msra.mxu0 %v287
  %312 = vmatprep.subr.bf16.mxu0 %v286
  %313 = vmatpush1.bf16.msra.mxu0 %v285
  %314 = vmatprep.subr.bf16.mxu0 %v284
  %315 = vmatpush1.bf16.msra.mxu0 %v283
  %316 = vmatprep.subr.bf16.mxu0 %v282
  %317 = vmatpush1.bf16.msra.mxu0 %v281
  %318 = vmatprep.subr.bf16.mxu0 %v280
  %319 = vmatpush1.bf16.msra.mxu0 %v279
  %320 = vmatprep.subr.bf16.mxu0 %v278
  %321 = vmatpush1.bf16.msra.mxu0 %v277
  %322 = vmatprep.subr.bf16.mxu0 0
  %323 = vmatpush2.bf16.msra.mxu0 0
  %324 = vmatprep.subr.bf16.mxu0 0
  %325 = vmatpush2.bf16.msra.mxu0 0
  %326 = vmatprep.subr.bf16.mxu0 0
  %327 = vmatpush2.bf16.msra.mxu0 0
  %328 = vmatprep.subr.bf16.mxu0 0
  %329 = vmatpush2.bf16.msra.mxu0 0
  %330 = vmatprep.subr.bf16.mxu0 0
  %331 = vmatpush2.bf16.msra.mxu0 0
  %332 = vmatprep.subr.bf16.mxu0 0
  %333 = vmatpush2.bf16.msra.mxu0 0
  %334 = vmatprep.subr.bf16.mxu0 0
  %335 = vmatpush2.bf16.msra.mxu0 0
  %336 = vmatprep.subr.bf16.mxu0 0
  %337 = vmatpush2.bf16.msra.mxu0 0
  %338 = vmatprep.mubr.bf16.mxu0 0
  %339 = vmatmul.mubr.bf16.gmra.mxu0 %v300
  %v340 = vpop.f32.mrf.mxu0
  %v341 = vadd.f32 0.0, %v340
  %v342 = vpop.f32.mrf.mxu0
  %v343 = vadd.f32 0.0, %v342
  %v344 = vpop.f32.mrf.mxu0
  %v345 = vpop.f32.mrf.mxu0
  %346 = vdwg.mxu0
  %347 = vmatprep.subr.bf16.mxu0 %v292
  %348 = vmatpush1.bf16.msra.mxu0 %v291
  %349 = vmatprep.subr.bf16.mxu0 %v290
  %350 = vmatpush1.bf16.msra.mxu0 %v289
  %351 = vmatprep.subr.bf16.mxu0 %v288
  %352 = vmatpush1.bf16.msra.mxu0 %v287
  %353 = vmatprep.subr.bf16.mxu0 %v286
  %354 = vmatpush1.bf16.msra.mxu0 %v285
  %355 = vmatprep.subr.bf16.mxu0 %v284
  %356 = vmatpush1.bf16.msra.mxu0 %v283
  %357 = vmatprep.subr.bf16.mxu0 %v282
  %358 = vmatpush1.bf16.msra.mxu0 %v281
  %359 = vmatprep.subr.bf16.mxu0 %v280
  %360 = vmatpush1.bf16.msra.mxu0 %v279
  %361 = vmatprep.subr.bf16.mxu0 %v278
  %362 = vmatpush1.bf16.msra.mxu0 %v277
  %363 = vmatprep.subr.bf16.mxu0 0
  %364 = vmatpush2.bf16.msra.mxu0 0
  %365 = vmatprep.subr.bf16.mxu0 0
  %366 = vmatpush2.bf16.msra.mxu0 0
  %367 = vmatprep.subr.bf16.mxu0 0
  %368 = vmatpush2.bf16.msra.mxu0 0
  %369 = vmatprep.subr.bf16.mxu0 0
  %370 = vmatpush2.bf16.msra.mxu0 0
  %371 = vmatprep.subr.bf16.mxu0 0
  %372 = vmatpush2.bf16.msra.mxu0 0
  %373 = vmatprep.subr.bf16.mxu0 0
  %374 = vmatpush2.bf16.msra.mxu0 0
  %375 = vmatprep.subr.bf16.mxu0 0
  %376 = vmatpush2.bf16.msra.mxu0 0
  %377 = vmatprep.subr.bf16.mxu0 0
  %378 = vmatpush2.bf16.msra.mxu0 0
  %379 = vmatprep.mubr.bf16.mxu0 0
  %380 = vmatmul.mubr.bf16.gmra.mxu0 %v295
  %v381 = vpop.f32.mrf.mxu0
  %v382 = vadd.f32 %v341, %v381
  %v383 = vpop.f32.mrf.mxu0
  %v384 = vadd.f32 %v343, %v383
  %v385 = vpop.f32.mrf.mxu0
  %v386 = vpop.f32.mrf.mxu0
  %387 = vdwg.mxu0
  %388 = vmatprep.subr.bf16.mxu0 %v292
  %389 = vmatpush1.bf16.msra.mxu0 %v291
  %390 = vmatprep.subr.bf16.mxu0 %v290
  %391 = vmatpush1.bf16.msra.mxu0 %v289
  %392 = vmatprep.subr.bf16.mxu0 %v288
  %393 = vmatpush1.bf16.msra.mxu0 %v287
  %394 = vmatprep.subr.bf16.mxu0 %v286
  %395 = vmatpush1.bf16.msra.mxu0 %v285
  %396 = vmatprep.subr.bf16.mxu0 %v284
  %397 = vmatpush1.bf16.msra.mxu0 %v283
  %398 = vmatprep.subr.bf16.mxu0 %v282
  %399 = vmatpush1.bf16.msra.mxu0 %v281
  %400 = vmatprep.subr.bf16.mxu0 %v280
  %401 = vmatpush1.bf16.msra.mxu0 %v279
  %402 = vmatprep.subr.bf16.mxu0 %v278
  %403 = vmatpush1.bf16.msra.mxu0 %v277
  %404 = vmatprep.subr.bf16.mxu0 0
  %405 = vmatpush2.bf16.msra.mxu0 0
  %406 = vmatprep.subr.bf16.mxu0 0
  %407 = vmatpush2.bf16.msra.mxu0 0
  %408 = vmatprep.subr.bf16.mxu0 0
  %409 = vmatpush2.bf16.msra.mxu0 0
  %410 = vmatprep.subr.bf16.mxu0 0
  %411 = vmatpush2.bf16.msra.mxu0 0
  %412 = vmatprep.subr.bf16.mxu0 0
  %413 = vmatpush2.bf16.msra.mxu0 0
  %414 = vmatprep.subr.bf16.mxu0 0
  %415 = vmatpush2.bf16.msra.mxu0 0
  %416 = vmatprep.subr.bf16.mxu0 0
  %417 = vmatpush2.bf16.msra.mxu0 0
  %418 = vmatprep.subr.bf16.mxu0 0
  %419 = vmatpush2.bf16.msra.mxu0 0
  %420 = vmatprep.mubr.bf16.mxu0 0
  %421 = vmatmul.mubr.bf16.gmra.mxu0 %v305
  %v422 = vpop.f32.mrf.mxu0
  %v423 = vadd.f32 0.0, %v422
  %v424 = vpop.f32.mrf.mxu0
  %v425 = vadd.f32 0.0, %v424
  %v426 = vpop.f32.mrf.mxu0
  %v427 = vpop.f32.mrf.mxu0
  %428 = vdwg.mxu0
  %v429 = vadd.f32 %v382, %v423
  %v430 = vadd.f32 %v384, %v425
  %v431 = vld [vmem:[%s3] sm:$0xff]
  %v432 = vrcp.pop %v431
  %v433 = vmul.f32 1.0, %v432
  %v434 = vmul.f32 %v431, 0.5
  %436 = vset.pattern.permute.xlu0 0
  %437 = vperm.xlu0 %436, %v434
  %v438 = vpop.permute.xlu0 %437
  %v440 = vadd.f32 %v429, %v438
  %v441 = vadd.f32 %v430, %v438
  %443 = vset.pattern.permute.xlu0 0
  %444 = vperm.xlu0 %443, %v433
  %v445 = vpop.permute.xlu0 %444
  %v447 = vmul.f32 %v440, %v445
  %v448 = vmul.f32 %v441, %v445
  %v449 = vfloor.f32 %v447
  %v450 = vfloor.f32 %v448
  %452 = vset.pattern.permute.xlu0 0
  %453 = vperm.xlu0 %452, %v431
  %v454 = vpop.permute.xlu0 %453
  %v456 = vmul.f32 %v454, %v449
  %v457 = vmul.f32 %v454, %v450
  %v458 = vsub.f32 %v429, %v456
  %v459 = vsub.f32 %v430, %v457
  %v460 = vmul.f32 %v458, %v458
  %v461 = vmul.f32 %v459, %v459
  %v462 = vrot.slane %v460, 4
  %v463 = vadd.f32 %v460, %v462
  %v464 = vrot.slane %v463, 2
  %v465 = vadd.f32 %v463, %v464
  %v466 = vrot.slane %v465, 1
  %v467 = vadd.f32 %v465, %v466
  %v468 = vrot.slane %v461, 4
  %v469 = vadd.f32 %v461, %v468
  %v470 = vrot.slane %v469, 2
  %v471 = vadd.f32 %v469, %v470
  %v472 = vrot.slane %v471, 1
  %v473 = vadd.f32 %v471, %v472
  %v474 = vrsqrt.pop %v467
  %v475 = vmul.f32 %v467, %v474
  %vm476 = vcmp.eq.f32.partialorder %v467, inf
  %v477 = vsel %vm476, %v467, %v475
  %vm478 = vcmp.eq.f32.partialorder %v467, 0.0
  %v479 = vand.u32 %v467, 2147483648
  %v480 = vsel %vm478, %v479, %v477
  %v481 = vrsqrt.pop %v473
  %v482 = vmul.f32 %v473, %v481
  %vm483 = vcmp.eq.f32.partialorder %v473, inf
  %v484 = vsel %vm483, %v473, %v482
  %vm485 = vcmp.eq.f32.partialorder %v473, 0.0
  %v486 = vand.u32 %v473, 2147483648
  %v487 = vsel %vm485, %v486, %v484
  %vm488 = vcmp.eq.s32.totalorder %v19, 3
  %v489 = vsel %vm488, %v480, %v458
  %v490 = vsel %vm488, %v487, %v459
  %491 = vst [vmem:[%s4] sm:$0xff] %v489
  %492 = vst [vmem:[%s4 + $0x8] sm:$0xff] %v490
  // Predicated region
  $region18: #{fn.1} parent=0 // pred_check
    _
  $region19: #{fn.1} parent=0 // pred_check_branch
    %494 = sbr.rel (0) target = $region21
  $region20: #{fn.1} parent=0 // pred_region
    _
  $region21: #{fn.1} parent=0 // pred_fallthru
    _
  // Predicated region
  $region22: #{fn.1} parent=0 // pred_check
    _
  $region23: #{fn.1} parent=0 // pred_check_branch
    %496 = sbr.rel (0) target = $region25
  $region24: #{fn.1} parent=0 // pred_region
    _
  $region25: #{fn.1} parent=0 // pred_fallthru
    _

</llo_original>
